<compile_context>
chip_gen: v6e
topology: v6e:2x2x1
jax: 0.10.0
libtpu: 0.0.40
codegen_flags: <defaults>
</compile_context>

<pallas_src>
import jax
import jax.numpy as jnp
from jax.experimental import pallas as pl
from jax.experimental.pallas import tpu as pltpu


def attention_kernel(enc_ref, dproj_ref, wenc_ref, o_ref):
    # enc_ref  : (S, BT, F)   encoder outputs, seq-major, native dtype
    # dproj_ref: (BT, A)      decoder-hidden projection + bias (f32, precomputed)
    # wenc_ref : (F, A)       encoder-column slice of the fused Linear weight
    # o_ref    : (BT, S)      softmax attention weights over src_len
    S, BT, F = enc_ref.shape
    A = wenc_ref.shape[1]

    # ONE MXU matmul for the whole block: merging the leading (S, BT) dims is a
    # layout-free reshape (BT is sublane-aligned, F stays on lanes).
    e = jnp.dot(enc_ref[...].reshape(S * BT, F), wenc_ref[...],
                preferred_element_type=jnp.float32)                  # (S*BT, A) f32

    # Broadcast-add the per-batch-row decoder projection over S, tanh (f32),
    # then one lane-axis reduce over A.
    energy = jnp.tanh(e.reshape(S, BT, A) + dproj_ref[...][None, :, :])
    scores = jnp.sum(energy, axis=-1)                                 # (S, BT)

    # Small XLU transpose into the (BT, S) output orientation, numerically
    # stable softmax over src_len (lane-axis reductions), one full-block store.
    att = scores.T                                                    # (BT, S)
    att = att - jnp.max(att, axis=-1, keepdims=True)
    num = jnp.exp(att)
    denom = jnp.sum(num, axis=-1, keepdims=True)
    # Exact divide keeps the 1e-5 match against the f32 reference;
    # pl.reciprocal(denom, approx=True) is a free-slot alternative if the
    # accuracy budget allows.
    o_ref[...] = (num / denom).astype(o_ref.dtype)


def _round_up(x, m):
    return (x + m - 1) // m * m


def _sublane_rows(itemsize):
    # (8,128) tiling for 32-bit; sub-32-bit dtypes pack along sublanes.
    return 8 if itemsize >= 4 else 32 // max(itemsize, 1)


def _vmem_params():
    """Generation-aware (VMEM budget for one block set, scoped-VMEM limit)."""
    try:
        cap = int(pltpu.get_tpu_info().vmem_capacity_bytes)
    except Exception:
        cap = 64 << 20                     # conservative default (v7x-sized)
    budget = int(max(8 << 20, min(48 << 20, (cap * 3) // 8)))
    limit = int(max(32 << 20, min(96 << 20, (cap * 3) // 4)))
    return budget, limit


def _pick_batch_tile(B, S, F, A, enc_itemsize, vmem_budget_bytes):
    """Largest batch tile (multiple of 8) whose double-buffered, (8,128)-padded
    blocks fit the VMEM budget.  Never returns an over-budget full-batch tile;
    the caller pads B up to a multiple of the returned tile instead."""
    B8 = _round_up(B, 8)
    sub_in = _sublane_rows(enc_itemsize)

    # Constant (weight) block, double-buffered like the other inputs.
    wenc_blk = _round_up(F, sub_in) * _round_up(A, 128) * enc_itemsize
    # Per-batch-row bytes with lane padding to 128 (enc + dec_proj + output).
    per_row = (S * _round_up(F, 128) * enc_itemsize
               + _round_up(A, 128) * 4
               + _round_up(S, 128) * 4)

    avail = vmem_budget_bytes // 2 - wenc_blk      # /2: pipeline double-buffers
    bt = max(8, min(B8, (max(avail, 0) // max(per_row, 1)) // 8 * 8))

    # Keep at least 2 grid steps when the batch allows it, so the 1-D
    # "parallel" axis can be sharded across both v7x TensorCores.
    if bt >= B8 and B8 >= 16:
        bt = _round_up(B8 // 2, 8)
    return bt


def pallas_attention(decoder_hidden, encoder_outputs, weight, bias, *, batch_tile=None):
    """decoder_hidden: [B, dec_hid]; encoder_outputs: [S, B, 2*enc_hid] (seq-first,
    native dtype, same as PyTorch); weight: [attn_dim, attn_in] (nn.Linear layout);
    bias: [attn_dim].  Returns softmax attention weights of shape [B, S] (f32)."""
    S, B, enc_feat = encoder_outputs.shape
    dec_hid = decoder_hidden.shape[1]
    attn_dim, attn_in = weight.shape
    assert attn_in == dec_hid + enc_feat

    # Split the fused Linear weight.  PyTorch concat order is
    # cat([repeated_dec_hidden, enc_outputs], -1) -> decoder columns come first.
    w_dec = weight[:, :dec_hid]                       # (attn_dim, dec_hid)
    w_enc = weight[:, dec_hid:]                       # (attn_dim, enc_feat)

    in_dtype = encoder_outputs.dtype
    itemsize = jnp.dtype(in_dtype).itemsize

    # Tiny per-batch projection of the decoder hidden state (+ bias), kept f32.
    dec_proj = (decoder_hidden.astype(jnp.float32) @ w_dec.T.astype(jnp.float32)
                + bias.astype(jnp.float32)[None, :])                 # (B, A)
    # Weight slice fed to the MXU in the encoder's native dtype (bf16-friendly).
    w_enc_t = w_enc.T.astype(in_dtype)                               # (F, A)

    vmem_budget, vmem_limit = _vmem_params()
    if batch_tile is None:
        bt = _pick_batch_tile(B, S, enc_feat, attn_dim, itemsize, vmem_budget)
    else:
        bt = batch_tile
    nb = pl.cdiv(B, bt)
    B_pad = nb * bt

    if B_pad != B:
        enc = jnp.pad(encoder_outputs, ((0, 0), (0, B_pad - B), (0, 0)))
        dec_proj = jnp.pad(dec_proj, ((0, B_pad - B), (0, 0)))
    else:
        enc = encoder_outputs

    cost = pl.CostEstimate(
        flops=2 * B_pad * S * enc_feat * attn_dim,
        transcendentals=B_pad * S * (attn_dim + 1),            # tanh + exp
        bytes_accessed=(itemsize * (S * B_pad * enc_feat + enc_feat * attn_dim)
                        + 4 * (B_pad * attn_dim + B_pad * S)),
    )

    out = pl.pallas_call(
        attention_kernel,
        out_shape=jax.ShapeDtypeStruct((B_pad, S), jnp.float32),
        grid_spec=pltpu.PrefetchScalarGridSpec(
            num_scalar_prefetch=0,
            grid=(nb,),
            in_specs=[
                # encoder_outputs fed as-is (seq-major, native dtype); the DMA
                # strides over the batch dim.
                pl.BlockSpec((S, bt, enc_feat), lambda i: (0, i, 0)),
                pl.BlockSpec((bt, attn_dim), lambda i: (i, 0)),
                pl.BlockSpec((enc_feat, attn_dim), lambda i: (0, 0)),
            ],
            out_specs=pl.BlockSpec((bt, S), lambda i: (i, 0)),
        ),
        compiler_params=pltpu.CompilerParams(
            dimension_semantics=("parallel",),
            vmem_limit_bytes=vmem_limit,
        ),
        cost_estimate=cost,
    )(enc, dec_proj, w_enc_t)
    return out[:B]


def reference_attention(decoder_hidden, encoder_outputs, weight, bias):
    S = encoder_outputs.shape[0]
    B = decoder_hidden.shape[0]
    rep_dec = jnp.broadcast_to(decoder_hidden[:, None, :],
                               (B, S, decoder_hidden.shape[1]))
    enc_perm = jnp.transpose(encoder_outputs, (1, 0, 2)).astype(jnp.float32)
    cat = jnp.concatenate([rep_dec.astype(jnp.float32), enc_perm], axis=2)
    energy = jnp.tanh(jnp.einsum("bsi,oi->bso", cat, weight.astype(jnp.float32)) + bias)
    attention = jnp.sum(energy, axis=2)
    return jax.nn.softmax(attention, axis=1)


if __name__ == "__main__":
    # Small shapes consistent with the module.
    enc_hid_dim = 16
    dec_hid_dim = 32
    attn_dim = 32
    B = 2
    S = 8
    attn_in = enc_hid_dim * 2 + dec_hid_dim   # 64

    key = jax.random.PRNGKey(0)
    k1, k2, k3, k4 = jax.random.split(key, 4)

    decoder_hidden = jax.random.normal(k1, (B, dec_hid_dim), dtype=jnp.float32)
    encoder_outputs = jax.random.normal(k2, (S, B, 2 * enc_hid_dim), dtype=jnp.float32)

    # Deterministic "Linear" parameters (PyTorch layout: weight [out, in], bias [out]).
    bound = 1.0 / (attn_in ** 0.5)
    weight = jax.random.uniform(k3, (attn_dim, attn_in),
                                minval=-bound, maxval=bound, dtype=jnp.float32)
    bias = jax.random.uniform(k4, (attn_dim,),
                              minval=-bound, maxval=bound, dtype=jnp.float32)

    out = pallas_attention(decoder_hidden, encoder_outputs, weight, bias)
    out = jax.block_until_ready(out)

    ref = reference_attention(decoder_hidden, encoder_outputs, weight, bias)
    assert out.shape == (B, S)
    assert jnp.allclose(out, ref, atol=1e-5, rtol=1e-5), "mismatch vs reference"
    assert jnp.allclose(jnp.sum(out, axis=1), jnp.ones((B,)), atol=1e-5)

    print("KERNEL_OK")
</pallas_src>

<mosaic_0001>
module attributes {stable_mosaic.version = 11 : i64} {
  func.func @attention_kernel(%arg0: i32, %arg1: memref<8x8x32xf32, #tpu.memory_space<vmem>>, %arg2: memref<8x32xf32, #tpu.memory_space<vmem>>, %arg3: memref<32x32xf32, #tpu.memory_space<vmem>>, %arg4: memref<8x8xf32, #tpu.memory_space<vmem>>) attributes {dimension_semantics = [#tpu.dimension_semantics<parallel>], iteration_bounds = array<i64: 1>, scalar_prefetch = 0 : i64, scratch_operands = 0 : i64, tpu.core_type = #tpu.core_type<tc>, window_params = [{transform_indices = @transform_0, window_bounds = array<i64: 8, 8, 32>}, {transform_indices = @transform_1, window_bounds = array<i64: 8, 32>}, {pipeline_mode = #tpu.pipeline_mode<synchronous>, transform_indices = @transform_2, window_bounds = array<i64: 32, 32>}, {transform_indices = @transform_3, window_bounds = array<i64: 8, 8>}]} {
    %c0 = arith.constant 0 : index
    %c0_0 = arith.constant 0 : index
    %c0_1 = arith.constant 0 : index
    %0 = vector.load %arg1[%c0, %c0_0, %c0_1] : memref<8x8x32xf32, #tpu.memory_space<vmem>>, vector<8x8x32xf32>
    %1 = vector.shape_cast %0 : vector<8x8x32xf32> to vector<64x32xf32>
    %c0_2 = arith.constant 0 : index
    %c0_3 = arith.constant 0 : index
    %2 = vector.load %arg3[%c0_2, %c0_3] : memref<32x32xf32, #tpu.memory_space<vmem>>, vector<32x32xf32>
    %cst = arith.constant dense<0.000000e+00> : vector<64x32xf32>
    %3 = tpu.matmul %1, %2, %cst {dimension_numbers = #tpu.dot_dimension_numbers<[1], [0], [0], [1], [0, 0, 1, 1], [], []>} : vector<64x32xf32>, vector<32x32xf32>, vector<64x32xf32> -> vector<64x32xf32>
    %4 = vector.shape_cast %3 : vector<64x32xf32> to vector<8x8x32xf32>
    %c0_4 = arith.constant 0 : index
    %c0_5 = arith.constant 0 : index
    %5 = vector.load %arg2[%c0_4, %c0_5] : memref<8x32xf32, #tpu.memory_space<vmem>>, vector<8x32xf32>
    %6 = vector.shape_cast %5 : vector<8x32xf32> to vector<1x8x32xf32>
    %7 = vector.broadcast %6 : vector<1x8x32xf32> to vector<8x8x32xf32>
    %8 = arith.addf %4, %7 : vector<8x8x32xf32>
    %9 = math.tanh %8 : vector<8x8x32xf32>
    %cst_6 = arith.constant dense<0.000000e+00> : vector<8x8xf32>
    %10 = vector.multi_reduction <add>, %9, %cst_6 [2] : vector<8x8x32xf32> to vector<8x8xf32>
    %11 = tpu.transpose %10, [1, 0] : vector<8x8xf32> -> vector<8x8xf32>
    %cst_7 = arith.constant dense<0xFF800000> : vector<8xf32>
    %12 = vector.multi_reduction <maximumf>, %11, %cst_7 [1] : vector<8x8xf32> to vector<8xf32>
    %13 = vector.shape_cast %12 : vector<8xf32> to vector<8x1xf32>
    %14 = vector.broadcast %13 : vector<8x1xf32> to vector<8x8xf32>
    %15 = arith.subf %11, %14 : vector<8x8xf32>
    %16 = math.exp %15 : vector<8x8xf32>
    %cst_8 = arith.constant dense<0.000000e+00> : vector<8xf32>
    %17 = vector.multi_reduction <add>, %16, %cst_8 [1] : vector<8x8xf32> to vector<8xf32>
    %18 = vector.shape_cast %17 : vector<8xf32> to vector<8x1xf32>
    %19 = vector.broadcast %18 : vector<8x1xf32> to vector<8x8xf32>
    %20 = arith.divf %16, %19 : vector<8x8xf32>
    %c0_9 = arith.constant 0 : index
    %c0_10 = arith.constant 0 : index
    %21 = vector.load %arg4[%c0_9, %c0_10] : memref<8x8xf32, #tpu.memory_space<vmem>>, vector<8x8xf32>
    tpu.vector_store %arg4[%c0_9, %c0_10], %20 {strides = array<i32>} : memref<8x8xf32, #tpu.memory_space<vmem>>, vector<8x8xf32>,
    return
  }
  func.func @transform_0(%arg0: i32) -> (i32, i32, i32) {
    %c0_i32 = arith.constant 0 : i32
    %c0_i32_0 = arith.constant 0 : i32
    %c0_i32_1 = arith.constant 0 : i32
    return %c0_i32, %arg0, %c0_i32_0 : i32, i32, i32
  }
  func.func @transform_1(%arg0: i32) -> (i32, i32) {
    %c0_i32 = arith.constant 0 : i32
    %c0_i32_0 = arith.constant 0 : i32
    return %arg0, %c0_i32 : i32, i32
  }
  func.func @transform_2(%arg0: i32) -> (i32, i32) {
    %c0_i32 = arith.constant 0 : i32
    %c0_i32_0 = arith.constant 0 : i32
    %c0_i32_1 = arith.constant 0 : i32
    return %c0_i32, %c0_i32_0 : i32, i32
  }
  func.func @transform_3(%arg0: i32) -> (i32, i32) {
    %c0_i32 = arith.constant 0 : i32
    %c0_i32_0 = arith.constant 0 : i32
    return %arg0, %c0_i32 : i32, i32
  }
}

</mosaic_0001>

<llo_original>
// kernel: tpu_custom_call.1
$region0: #{tpu_custom_call.1}
  #allocation0 [shape = 'u32[]', space=smem, size = 0x4, offset = 0x4, fixed_abs, tag = 'smem constant byte address 0x4 - core index']
  #allocation1 [shape = 'u32[144,128]{1,0:T(1,128)}', space=vmem, size = 0x12000, scoped, tag = 'internal scratch']
  %s0 = inlined_call_operand.hbm [shape: f32[8,8,32], index: 0, kind: input, shape index: {}]
  %s1 = inlined_call_operand.hbm [shape: f32[8,32], index: 1, kind: input, shape index: {}]
  %s2 = inlined_call_operand.hbm [shape: f32[32,32], index: 2, kind: input, shape index: {}]
  %s3 = inlined_call_operand.hbm [shape: f32[8,8], index: 3, kind: output, shape index: {}]
  %s4 = sld [smem:[#allocation0]]
  $region34: #{tpu_custom_call.1} parent=0
    _
  %s6 = ssub.s32 1, %s4
  %s7 = scalar_select 0, %s6, %s4
  $region1: #{tpu_custom_call.1} parent=0
    #allocation2 [shape = 'u8[32768]{0}', space=vmem, size = 0x8000, scoped, tag = 'input window, operand 0, single buffered']
    #allocation3 [shape = 's32[1]{0}', space=sflag, size = 0x4, scoped, tag = 'scoped memory for tpu_custom_call.1']
    #allocation4 [shape = 's32[1]{0}', space=sflag, size = 0x4, scoped, tag = 'scoped memory for tpu_custom_call.1']
    #allocation5 [shape = 'u8[4096]{0}', space=vmem, size = 0x1000, scoped, tag = 'input window, operand 1, single buffered']
    #allocation6 [shape = 's32[1]{0}', space=sflag, size = 0x4, scoped, tag = 'scoped memory for tpu_custom_call.1']
    #allocation7 [shape = 'u8[16384]{0}', space=vmem, size = 0x4000, scoped, tag = 'input window, operand 2, single buffered']
    #allocation8 [shape = 'u8[4096]{0}', space=vmem, size = 0x1000, scoped, tag = 'output window, operand 0, single buffered']
    %8 = vsyncpa [#allocation3], 0
    %9 = vsyncpa [#allocation6], 0
    %10 = vsyncpa [#allocation4], 0
    // Predicated region
    $region2: #{tpu_custom_call.1} parent=1 // pred_check
      _
    $region3: #{tpu_custom_call.1} parent=1 // pred_check_branch
      %12 = sbr.rel (0) target = $region5
    $region4: #{tpu_custom_call.1} parent=1 // pred_region
      %s14 = ssub.s32 1024, 1024
      %15 = vsyncadd [#allocation3], %s14
      %s16 = sshll.u32 [#allocation2], 4
      %s17 = int_to_ptr.vmem [resolvable:$true] %s16
      %22 = dma.hbm_to_vmem [thread:$0]  %s0, 1024, %s17, [#allocation3], 128, 128, 8
    $region5: #{tpu_custom_call.1} parent=1 // pred_fallthru
      _
    // Predicated region
    $region6: #{tpu_custom_call.1} parent=1 // pred_check
      _
    $region7: #{tpu_custom_call.1} parent=1 // pred_check_branch
      %24 = sbr.rel (0) target = $region9
    $region8: #{tpu_custom_call.1} parent=1 // pred_region
      %s26 = ssub.s32 128, 128
      %27 = vsyncadd [#allocation6], %s26
      %s29 = sshll.u32 [#allocation5], 4
      %s30 = int_to_ptr.vmem [resolvable:$true] %s29
      %32 = dma.hbm_to_vmem [thread:$0]  %s1, 128, %s30, [#allocation6]
    $region9: #{tpu_custom_call.1} parent=1 // pred_fallthru
      _
    // Predicated region
    $region10: #{tpu_custom_call.1} parent=1 // pred_check
      _
    $region11: #{tpu_custom_call.1} parent=1 // pred_check_branch
      %34 = sbr.rel (0) target = $region13
    $region12: #{tpu_custom_call.1} parent=1 // pred_region
      %s36 = ssub.s32 512, 512
      %37 = vsyncadd [#allocation6], %s36
      %s38 = sshll.u32 [#allocation7], 4
      %s39 = int_to_ptr.vmem [resolvable:$true] %s38
      %44 = dma.hbm_to_vmem [thread:$0]  %s2, 512, %s39, [#allocation6], 128, 128, 8
    $region13: #{tpu_custom_call.1} parent=1 // pred_fallthru
      _
    // Predicated region
    $region14: #{tpu_custom_call.1} parent=1 // pred_check
      _
    $region15: #{tpu_custom_call.1} parent=1 // pred_check_branch
      %46 = sbr.rel (0) target = $region17
    $region16: #{tpu_custom_call.1} parent=1 // pred_region
      %47 = dma.done [#allocation3], 1024
    $region17: #{tpu_custom_call.1} parent=1 // pred_fallthru
      _
    // Predicated region
    $region18: #{tpu_custom_call.1} parent=1 // pred_check
      _
    $region19: #{tpu_custom_call.1} parent=1 // pred_check_branch
      %49 = sbr.rel (0) target = $region21
    $region20: #{tpu_custom_call.1} parent=1 // pred_region
      %50 = dma.done [#allocation6], 128
    $region21: #{tpu_custom_call.1} parent=1 // pred_fallthru
      _
    // Predicated region
    $region22: #{tpu_custom_call.1} parent=1 // pred_check
      _
    $region23: #{tpu_custom_call.1} parent=1 // pred_check_branch
      %52 = sbr.rel (0) target = $region25
    $region24: #{tpu_custom_call.1} parent=1 // pred_region
      %53 = dma.done [#allocation6], 512
    $region25: #{tpu_custom_call.1} parent=1 // pred_fallthru
      _
    %v54 = vld [vmem:[#allocation2] sm:$0xff]
    %v55 = vld [vmem:[#allocation2 + $0x8] sm:$0xff]
    %v56 = vld [vmem:[#allocation2 + $0x10] sm:$0xff]
    %v57 = vld [vmem:[#allocation2 + $0x18] sm:$0xff]
    %v58 = vld [vmem:[#allocation2 + $0x20] sm:$0xff]
    %v59 = vld [vmem:[#allocation2 + $0x28] sm:$0xff]
    %v60 = vld [vmem:[#allocation2 + $0x30] sm:$0xff]
    %v61 = vld [vmem:[#allocation2 + $0x38] sm:$0xff]
    %v62 = vld [vmem:[#allocation7] sm:$0xff]
    %v63 = vld [vmem:[#allocation7 + $0x8] sm:$0xff]
    %v64 = vld [vmem:[#allocation7 + $0x10] sm:$0xff]
    %v65 = vld [vmem:[#allocation7 + $0x18] sm:$0xff]
    %vm66 = vcmask 261120
    %v68 = vsel %vm66, %v54, 0
    %v71 = vsel %vm66, %v55, 0
    %v74 = vsel %vm66, %v56, 0
    %v77 = vsel %vm66, %v57, 0
    %v80 = vsel %vm66, %v58, 0
    %v83 = vsel %vm66, %v59, 0
    %v86 = vsel %vm66, %v60, 0
    %v89 = vsel %vm66, %v61, 0
    %91 = vmatprep.subr.mxu0 0.0
    %92 = vmatpush1.msra.mxu0 0.0
    %93 = vmatprep.subr.mxu0 0.0
    %94 = vmatpush1.msra.mxu0 0.0
    %95 = vmatprep.subr.mxu0 0.0
    %96 = vmatpush1.msra.mxu0 0.0
    %97 = vmatprep.subr.mxu0 0.0
    %98 = vmatpush1.msra.mxu0 0.0
    %99 = vmatprep.subr.mxu0 0.0
    %100 = vmatpush1.msra.mxu0 0.0
    %101 = vmatprep.subr.mxu0 0.0
    %102 = vmatpush1.msra.mxu0 0.0
    %103 = vmatprep.subr.mxu0 0.0
    %104 = vmatpush1.msra.mxu0 0.0
    %105 = vmatprep.subr.mxu0 0.0
    %106 = vmatpush1.msra.mxu0 0.0
    %107 = vmatprep.subr.mxu0 0.0
    %108 = vmatpush1.msra.mxu0 0.0
    %109 = vmatprep.subr.mxu0 0.0
    %110 = vmatpush1.msra.mxu0 0.0
    %111 = vmatprep.subr.mxu0 0.0
    %112 = vmatpush1.msra.mxu0 0.0
    %113 = vmatprep.subr.mxu0 0.0
    %114 = vmatpush1.msra.mxu0 0.0
    %115 = vmatprep.subr.mxu0 0.0
    %116 = vmatpush1.msra.mxu0 %v65
    %117 = vmatprep.subr.mxu0 0.0
    %118 = vmatpush1.msra.mxu0 %v64
    %119 = vmatprep.subr.mxu0 0.0
    %120 = vmatpush1.msra.mxu0 %v63
    %121 = vmatprep.subr.mxu0 0.0
    %122 = vmatpush1.msra.mxu0 %v62
    %123 = vmatprep.subr.mxu0 0.0
    %124 = vmatpush2.msra.mxu0 0.0
    %125 = vmatprep.subr.mxu0 0.0
    %126 = vmatpush2.msra.mxu0 0.0
    %127 = vmatprep.subr.mxu0 0.0
    %128 = vmatpush2.msra.mxu0 0.0
    %129 = vmatprep.subr.mxu0 0.0
    %130 = vmatpush2.msra.mxu0 0.0
    %131 = vmatprep.subr.mxu0 0.0
    %132 = vmatpush2.msra.mxu0 0.0
    %133 = vmatprep.subr.mxu0 0.0
    %134 = vmatpush2.msra.mxu0 0.0
    %135 = vmatprep.subr.mxu0 0.0
    %136 = vmatpush2.msra.mxu0 0.0
    %137 = vmatprep.subr.mxu0 0.0
    %138 = vmatpush2.msra.mxu0 0.0
    %139 = vmatprep.subr.mxu0 0.0
    %140 = vmatpush2.msra.mxu0 0.0
    %141 = vmatprep.subr.mxu0 0.0
    %142 = vmatpush2.msra.mxu0 0.0
    %143 = vmatprep.subr.mxu0 0.0
    %144 = vmatpush2.msra.mxu0 0.0
    %145 = vmatprep.subr.mxu0 0.0
    %146 = vmatpush2.msra.mxu0 0.0
    %147 = vmatprep.subr.mxu0 0.0
    %148 = vmatpush2.msra.mxu0 0.0
    %149 = vmatprep.subr.mxu0 0.0
    %150 = vmatpush2.msra.mxu0 0.0
    %151 = vmatprep.subr.mxu0 0.0
    %152 = vmatpush2.msra.mxu0 0.0
    %153 = vmatprep.subr.mxu0 0.0
    %154 = vmatpush2.msra.mxu0 0.0
    %155 = vmatprep.mubr.f32.mxu0 0.0
    %156 = vmatmul.mubr.f32.gmra.mxu0 %v68
    %v157 = vpop.f32.mrf.mxu0
    %v158 = vadd.f32 0.0, %v157
    %v159 = vpop.f32.mrf.mxu0
    %160 = vmatprep.mubr.f32.mxu0 0.0
    %161 = vmatmul.mubr.f32.gmra.mxu0 %v71
    %v162 = vpop.f32.mrf.mxu0
    %v163 = vadd.f32 0.0, %v162
    %v164 = vpop.f32.mrf.mxu0
    %165 = vmatprep.mubr.f32.mxu0 0.0
    %166 = vmatmul.mubr.f32.gmra.mxu0 %v74
    %v167 = vpop.f32.mrf.mxu0
    %v168 = vadd.f32 0.0, %v167
    %v169 = vpop.f32.mrf.mxu0
    %170 = vmatprep.mubr.f32.mxu0 0.0
    %171 = vmatmul.mubr.f32.gmra.mxu0 %v77
    %v172 = vpop.f32.mrf.mxu0
    %v173 = vadd.f32 0.0, %v172
    %v174 = vpop.f32.mrf.mxu0
    %175 = vmatprep.mubr.f32.mxu0 0.0
    %176 = vmatmul.mubr.f32.gmra.mxu0 %v80
    %v177 = vpop.f32.mrf.mxu0
    %v178 = vadd.f32 0.0, %v177
    %v179 = vpop.f32.mrf.mxu0
    %180 = vmatprep.mubr.f32.mxu0 0.0
    %181 = vmatmul.mubr.f32.gmra.mxu0 %v83
    %v182 = vpop.f32.mrf.mxu0
    %v183 = vadd.f32 0.0, %v182
    %v184 = vpop.f32.mrf.mxu0
    %185 = vmatprep.mubr.f32.mxu0 0.0
    %186 = vmatmul.mubr.f32.gmra.mxu0 %v86
    %v187 = vpop.f32.mrf.mxu0
    %v188 = vadd.f32 0.0, %v187
    %v189 = vpop.f32.mrf.mxu0
    %190 = vmatprep.mubr.f32.mxu0 0.0
    %191 = vmatmul.mubr.f32.gmra.mxu0 %v89
    %v192 = vpop.f32.mrf.mxu0
    %v193 = vadd.f32 0.0, %v192
    %v194 = vpop.f32.mrf.mxu0
    %195 = vdwg.mxu0
    %v196 = vld [vmem:[#allocation5] sm:$0xff]
    %v197 = vadd.f32 %v158, %v196
    %v198 = vadd.f32 %v163, %v196
    %v199 = vadd.f32 %v168, %v196
    %v200 = vadd.f32 %v173, %v196
    %v201 = vadd.f32 %v178, %v196
    %v202 = vadd.f32 %v183, %v196
    %v203 = vadd.f32 %v188, %v196
    %v204 = vadd.f32 %v193, %v196
    %v205 = vtanh.pop %v197
    %v206 = vtanh.pop %v198
    %v207 = vtanh.pop %v199
    %v208 = vtanh.pop %v200
    %v209 = vtanh.pop %v201
    %v210 = vtanh.pop %v202
    %v211 = vtanh.pop %v203
    %v212 = vtanh.pop %v204
    %v213 = vsel %vm66, %v205, 0.0
    %214 = vadd.xlane.f32.xlu0 %v213
    %v215 = vpop.xlane.xlu0 %214
    %v216 = vsel %vm66, %v206, 0.0
    %217 = vadd.xlane.f32.xlu0 %v216
    %v218 = vpop.xlane.xlu0 %217
    %v219 = vsel %vm66, %v207, 0.0
    %220 = vadd.xlane.f32.xlu0 %v219
    %v221 = vpop.xlane.xlu0 %220
    %v222 = vsel %vm66, %v208, 0.0
    %223 = vadd.xlane.f32.xlu0 %v222
    %v224 = vpop.xlane.xlu0 %223
    %v225 = vsel %vm66, %v209, 0.0
    %226 = vadd.xlane.f32.xlu0 %v225
    %v227 = vpop.xlane.xlu0 %226
    %v228 = vsel %vm66, %v210, 0.0
    %229 = vadd.xlane.f32.xlu0 %v228
    %v230 = vpop.xlane.xlu0 %229
    %v231 = vsel %vm66, %v211, 0.0
    %232 = vadd.xlane.f32.xlu0 %v231
    %v233 = vpop.xlane.xlu0 %232
    %v234 = vsel %vm66, %v212, 0.0
    %235 = vadd.xlane.f32.xlu0 %v234
    %v236 = vpop.xlane.xlu0 %235
    %v245 = vlaneseq
    %v246 = vand.u32 %v245, 127
    %v247 = vlaneseq
    %v248 = vshrl.u32 %v247, 7
    %v249 = vsub.s32 %v246, %v248
    %v250 = vrot.slane %v215, %v249
    %v251 = vlaneseq
    %v252 = vshrl.u32 %v251, 7
    %v253 = vsub.s32 %v246, %v252
    %v254 = vrot.slane %v218, %v253
    %v255 = vlaneseq
    %v256 = vshrl.u32 %v255, 7
    %v257 = vsub.s32 %v246, %v256
    %v258 = vrot.slane %v221, %v257
    %v259 = vlaneseq
    %v260 = vshrl.u32 %v259, 7
    %v261 = vsub.s32 %v246, %v260
    %v262 = vrot.slane %v224, %v261
    %v263 = vlaneseq
    %v264 = vshrl.u32 %v263, 7
    %v265 = vsub.s32 %v246, %v264
    %v266 = vrot.slane %v227, %v265
    %v267 = vlaneseq
    %v268 = vshrl.u32 %v267, 7
    %v269 = vsub.s32 %v246, %v268
    %v270 = vrot.slane %v230, %v269
    %v271 = vlaneseq
    %v272 = vshrl.u32 %v271, 7
    %v273 = vsub.s32 %v246, %v272
    %v274 = vrot.slane %v233, %v273
    %v275 = vlaneseq
    %v276 = vshrl.u32 %v275, 7
    %v277 = vsub.s32 %v246, %v276
    %v278 = vrot.slane %v236, %v277
    %vm279 = vcmask 1041409
    %v280 = vsel %vm279, %v254, %v250
    %vm281 = vcmask 1042434
    %v282 = vsel %vm281, %v258, %v280
    %vm283 = vcmask 1043459
    %v284 = vsel %vm283, %v262, %v282
    %vm285 = vcmask 1044484
    %v286 = vsel %vm285, %v266, %v284
    %vm287 = vcmask 1045509
    %v288 = vsel %vm287, %v270, %v286
    %vm289 = vcmask 1046534
    %v290 = vsel %vm289, %v274, %v288
    %vm291 = vcmask 1047559
    %v292 = vsel %vm291, %v278, %v290
    %294 = vxpose.xlu0.b32.start [1/16] %v292, 128
    %295 = vxpose.xlu0.b32.cont [2/16] 0.0, 128
    %296 = vxpose.xlu0.b32.cont [3/16] 0.0, 128
    %297 = vxpose.xlu0.b32.cont [4/16] 0.0, 128
    %298 = vxpose.xlu0.b32.cont [5/16] 0.0, 128
    %299 = vxpose.xlu0.b32.cont [6/16] 0.0, 128
    %300 = vxpose.xlu0.b32.cont [7/16] 0.0, 128
    %301 = vxpose.xlu0.b32.cont [8/16] 0.0, 128
    %302 = vxpose.xlu0.b32.cont [9/16] 0.0, 128
    %303 = vxpose.xlu0.b32.cont [10/16] 0.0, 128
    %304 = vxpose.xlu0.b32.cont [11/16] 0.0, 128
    %305 = vxpose.xlu0.b32.cont [12/16] 0.0, 128
    %306 = vxpose.xlu0.b32.cont [13/16] 0.0, 128
    %307 = vxpose.xlu0.b32.cont [14/16] 0.0, 128
    %308 = vxpose.xlu0.b32.cont [15/16] 0.0, 128
    %309 = vxpose.xlu0.b32.end [16/16] 0.0, 128
    %v310 = vpop.trf.xlu0
    %v311 = vpop.trf.xlu0
    %v312 = vpop.trf.xlu0
    %v313 = vpop.trf.xlu0
    %v314 = vpop.trf.xlu0
    %v315 = vpop.trf.xlu0
    %v316 = vpop.trf.xlu0
    %v317 = vpop.trf.xlu0
    %v318 = vpop.trf.xlu0
    %v319 = vpop.trf.xlu0
    %v320 = vpop.trf.xlu0
    %v321 = vpop.trf.xlu0
    %v322 = vpop.trf.xlu0
    %v323 = vpop.trf.xlu0
    %v324 = vpop.trf.xlu0
    %v325 = vpop.trf.xlu0
    %vm326 = vcmask 64512
    %v327 = vsel %vm326, %v310, -inf
    %328 = vmax.xlane.f32.xlu0 %v327
    %v329 = vpop.xlane.xlu0 %328
    %v330 = vsub.f32 %v310, %v329
    %v331 = vmul.f32 %v330, 1.442695
    %v332 = vpow.pop %v331
    %v333 = vsel %vm326, %v332, 0.0
    %334 = vadd.xlane.f32.xlu0 %v333
    %v335 = vpop.xlane.xlu0 %334
    %v336 = vrcp.pop %v335
    %v337 = vmul.f32 %v332, %v336
    %338 = vst.msk [vmem:[#allocation8] sm:$0xff] %vm326, %v337
    // Predicated region
    $region26: #{tpu_custom_call.1} parent=1 // pred_check
      _
    $region27: #{tpu_custom_call.1} parent=1 // pred_check_branch
      %340 = sbr.rel (0) target = $region29
    $region28: #{tpu_custom_call.1} parent=1 // pred_region
      %s342 = ssub.s32 128, 128
      %343 = vsyncadd [#allocation4], %s342
      %s345 = sshll.u32 [#allocation8], 4
      %s346 = int_to_ptr.vmem [resolvable:$true] %s345
      %348 = dma.vmem_to_hbm [thread:$0]  %s346, 128, %s3, [#allocation4]
    $region29: #{tpu_custom_call.1} parent=1 // pred_fallthru
      _
    // Predicated region
    $region30: #{tpu_custom_call.1} parent=1 // pred_check
      _
    $region31: #{tpu_custom_call.1} parent=1 // pred_check_branch
      %350 = sbr.rel (0) target = $region33
    $region32: #{tpu_custom_call.1} parent=1 // pred_region
      %351 = dma.done [#allocation4], 128
    $region33: #{tpu_custom_call.1} parent=1 // pred_fallthru
      _
    %352 = vsyncpa [#allocation3], 1
    %353 = vsyncpa [#allocation6], 1
    %354 = vsyncpa [#allocation4], 1

</llo_original>
